<compile_context>
chip_gen: v5e
topology: v5e:2x2
jax: 0.10.0
libtpu: 0.0.40
codegen_flags: <defaults>
</compile_context>

<pallas_src>
from dataclasses import dataclass
import functools

import jax
import jax.numpy as jnp
from jax.experimental import pallas as pl
from jax.experimental.pallas import tpu as pltpu


@dataclass
class GPTConfig:
    vocab_size: int = 65
    context_length: int = 8
    n_embd: int = 32
    head_size: int = 8
    num_heads: int = 4


def _gpt_kernel(tok_ref, pos_ref, wqkv_ref, lmw_ref, lmb_ref, out_ref,
                *, n_embd, head_size, num_heads):
    # tok_ref:  (1, T, C)  token embeddings for this batch element (f32)
    # pos_ref:  (T, C)     position embeddings (f32)
    # wqkv_ref: (C, 3*H*hs) packed [q | k | v] projection weights (bf16)
    # lmw_ref:  (H*hs, Vp)  lm_head weight, vocab padded to 128 lanes (bf16)
    # lmb_ref:  (1, Vp)     lm_head bias (f32, zero in padded columns)
    # out_ref:  (1, T, Vp)  padded logits (f32)
    T = tok_ref.shape[1]
    H, hs = num_heads, head_size
    Vp = lmw_ref.shape[1]
    scale = jnp.float32(n_embd) ** -0.5          # matches PyTorch: C ** -0.5

    # Fused positional add (f32 on the VPU), bf16 operands for the MXU.
    x = tok_ref[0] + pos_ref[...]                               # (T, C)
    xb = x.astype(jnp.bfloat16)

    # One fused qkv projection: (T, C) @ (C, 3*H*hs) -> 96 output lanes,
    # a single MXU push instead of 12 eight-lane matmuls.
    qkv = jnp.dot(xb, wqkv_ref[...],
                  preferred_element_type=jnp.float32)           # (T, 3*H*hs)

    row = jax.lax.broadcasted_iota(jnp.int32, (T, T), 0)
    col = jax.lax.broadcasted_iota(jnp.int32, (T, T), 1)
    causal = row >= col                                         # lower-triangular

    # Accumulate logits per head: avoids the lane-axis concat and keeps the
    # lm_head matmul lane-dense (128 output lanes).
    logits = jnp.broadcast_to(lmb_ref[...], (T, Vp)).astype(jnp.float32)
    for h in range(H):                                          # static unroll
        q = qkv[:, h * hs:(h + 1) * hs] * scale                 # fold scale into q
        k = qkv[:, (H + h) * hs:(H + h + 1) * hs]
        v = qkv[:, (2 * H + h) * hs:(2 * H + h + 1) * hs]

        # q @ k.T without materializing a transpose
        att = jax.lax.dot_general(
            q.astype(jnp.bfloat16), k.astype(jnp.bfloat16),
            (((1,), (1,)), ((), ())),
            preferred_element_type=jnp.float32)                 # (T, T)
        att = jnp.where(causal, att, -jnp.inf)
        att = att - jnp.max(att, axis=-1, keepdims=True)
        e = jnp.exp(att)                                        # f32 softmax math
        p = e * pl.reciprocal(jnp.sum(e, axis=-1, keepdims=True), approx=True)

        head = jnp.dot(p.astype(jnp.bfloat16), v.astype(jnp.bfloat16),
                       preferred_element_type=jnp.float32)      # (T, hs)
        logits += jnp.dot(head.astype(jnp.bfloat16),
                          lmw_ref[h * hs:(h + 1) * hs, :],
                          preferred_element_type=jnp.float32)   # (T, Vp)

    out_ref[0] = logits


def gpt_pallas_forward(tok_x, pos_emb, wqkv, lm_w_pad, lm_b_pad, config):
    B, T, C = tok_x.shape
    H, hs = config.num_heads, config.head_size
    Vp = lm_w_pad.shape[1]

    kernel = functools.partial(_gpt_kernel, n_embd=C, head_size=hs, num_heads=H)
    # grid=(B,) marked "parallel": on v7x the two batch elements land on the
    # two TensorCores; on v5e/v6e it is a 2-step serial loop whose per-step
    # overhead (~0.35 us) is negligible at this size.
    return pl.pallas_call(
        kernel,
        out_shape=jax.ShapeDtypeStruct((B, T, Vp), jnp.float32),
        grid_spec=pltpu.PrefetchScalarGridSpec(
            num_scalar_prefetch=0,
            grid=(B,),
            in_specs=[
                pl.BlockSpec((1, T, C), lambda b: (b, 0, 0)),
                pl.BlockSpec((T, C), lambda b: (0, 0)),
                pl.BlockSpec((C, 3 * H * hs), lambda b: (0, 0)),
                pl.BlockSpec((H * hs, Vp), lambda b: (0, 0)),
                pl.BlockSpec((1, Vp), lambda b: (0, 0)),
            ],
            out_specs=pl.BlockSpec((1, T, Vp), lambda b: (b, 0, 0)),
        ),
        compiler_params=pltpu.CompilerParams(
            dimension_semantics=("parallel",)),
    )(tok_x, pos_emb, wqkv, lm_w_pad, lm_b_pad)


def gpt_forward(inputs, params, config, targets=None):
    """Mirrors GPT.forward. inputs: (B, T) int32 token ids."""
    B, T = inputs.shape
    V = config.vocab_size

    tok_embd = params["tok_emb"][inputs]                  # (B, T, C) gather (glue)
    pos_embd = params["pos_emb"][:T]                      # (T, C)

    logits_pad = gpt_pallas_forward(
        tok_embd, pos_embd, params["wqkv"],
        params["lm_w_pad"], params["lm_b_pad"], config)   # (B, T, Vp)
    logits = logits_pad[..., :V]                          # drop lane padding

    if targets is None:
        return logits, None

    # cross-entropy in plain JAX (glue), on the unpadded vocab
    flat_logits = logits.reshape(B * T, V)
    flat_targets = targets.reshape(B * T)
    logz = jax.nn.logsumexp(flat_logits, axis=-1)
    picked = jnp.take_along_axis(flat_logits, flat_targets[:, None], axis=-1)[:, 0]
    loss = jnp.mean(logz - picked)
    return logits, loss


def init_params(key, config):
    """Init natural (PyTorch-equivalent) weights, then pack ONCE into the
    kernel layout: stacked qkv (C, 3*H*hs) bf16 and vocab padded to 128."""
    C, hs, H, V, L = (config.n_embd, config.head_size, config.num_heads,
                      config.vocab_size, config.context_length)
    ks = jax.random.split(key, 7)
    s = 0.02
    # stored as (in, out) so kernel does x @ W (PyTorch Linear stores (out, in))
    wk = s * jax.random.normal(ks[2], (H, C, hs), jnp.float32)
    wq = s * jax.random.normal(ks[3], (H, C, hs), jnp.float32)
    wv = s * jax.random.normal(ks[4], (H, C, hs), jnp.float32)
    lm_w = s * jax.random.normal(ks[5], (H * hs, V), jnp.float32)
    lm_b = s * jax.random.normal(ks[6], (1, V), jnp.float32)

    # Pack: [Wq_h0..Wq_h{H-1} | Wk_... | Wv_...] along the output (lane) axis.
    def heads_concat(w):                                   # (H, C, hs) -> (C, H*hs)
        return jnp.transpose(w, (1, 0, 2)).reshape(C, H * hs)

    wqkv = jnp.concatenate(
        [heads_concat(wq), heads_concat(wk), heads_concat(wv)],
        axis=-1).astype(jnp.bfloat16)                      # (C, 3*H*hs)

    Vp = ((V + 127) // 128) * 128                          # lane-dense vocab (128)
    lm_w_pad = jnp.zeros((H * hs, Vp), jnp.bfloat16).at[:, :V].set(
        lm_w.astype(jnp.bfloat16))
    lm_b_pad = jnp.zeros((1, Vp), jnp.float32).at[:, :V].set(lm_b)

    return {
        "tok_emb": s * jax.random.normal(ks[0], (V, C), jnp.float32),
        "pos_emb": s * jax.random.normal(ks[1], (L, C), jnp.float32),
        "wqkv": wqkv,
        "lm_w_pad": lm_w_pad,
        "lm_b_pad": lm_b_pad,
    }


if __name__ == "__main__":
    config = GPTConfig(vocab_size=65, context_length=8, n_embd=32,
                       head_size=8, num_heads=4)
    key = jax.random.PRNGKey(0)
    pkey, ikey, tkey = jax.random.split(key, 3)

    params = init_params(pkey, config)

    B, T = 2, config.context_length
    inputs = jax.random.randint(ikey, (B, T), 0, config.vocab_size, jnp.int32)
    targets = jax.random.randint(tkey, (B, T), 0, config.vocab_size, jnp.int32)

    fwd = jax.jit(functools.partial(gpt_forward, config=config))
    logits, loss = fwd(inputs, params, targets=targets)
    jax.block_until_ready((logits, loss))

    assert logits.shape == (B, T, config.vocab_size)
    assert loss.shape == ()
    print("KERNEL_OK")
</pallas_src>

<mosaic_0001>
module attributes {stable_mosaic.version = 11 : i64} {
  func.func @_gpt_kernel(%arg0: i32, %arg1: memref<1x8x32xf32, #tpu.memory_space<vmem>>, %arg2: memref<8x32xf32, #tpu.memory_space<vmem>>, %arg3: memref<32x96xbf16, #tpu.memory_space<vmem>>, %arg4: memref<32x128xbf16, #tpu.memory_space<vmem>>, %arg5: memref<1x128xf32, #tpu.memory_space<vmem>>, %arg6: memref<1x8x128xf32, #tpu.memory_space<vmem>>) attributes {dimension_semantics = [#tpu.dimension_semantics<parallel>], iteration_bounds = array<i64: 2>, scalar_prefetch = 0 : i64, scratch_operands = 0 : i64, tpu.core_type = #tpu.core_type<tc>, window_params = [{transform_indices = @transform_0, window_bounds = array<i64: 1, 8, 32>}, {pipeline_mode = #tpu.pipeline_mode<synchronous>, transform_indices = @transform_1, window_bounds = array<i64: 8, 32>}, {pipeline_mode = #tpu.pipeline_mode<synchronous>, transform_indices = @transform_2, window_bounds = array<i64: 32, 96>}, {pipeline_mode = #tpu.pipeline_mode<synchronous>, transform_indices = @transform_3, window_bounds = array<i64: 32, 128>}, {pipeline_mode = #tpu.pipeline_mode<synchronous>, transform_indices = @transform_4, window_bounds = array<i64: 1, 128>}, {transform_indices = @transform_5, window_bounds = array<i64: 1, 8, 128>}]} {
    %cst = arith.constant 3.200000e+01 : f32
    %cst_0 = arith.constant -5.000000e-01 : f32
    %0 = math.powf %cst, %cst_0 : f32
    %c0 = arith.constant 0 : index
    %c0_1 = arith.constant 0 : index
    %c0_2 = arith.constant 0 : index
    %1 = vector.load %arg1[%c0, %c0_1, %c0_2] : memref<1x8x32xf32, #tpu.memory_space<vmem>>, vector<1x8x32xf32>
    %2 = vector.shape_cast %1 : vector<1x8x32xf32> to vector<8x32xf32>
    %c0_3 = arith.constant 0 : index
    %c0_4 = arith.constant 0 : index
    %3 = vector.load %arg2[%c0_3, %c0_4] : memref<8x32xf32, #tpu.memory_space<vmem>>, vector<8x32xf32>
    %4 = arith.addf %2, %3 : vector<8x32xf32>
    %5 = arith.truncf %4 : vector<8x32xf32> to vector<8x32xbf16>
    %c0_5 = arith.constant 0 : index
    %c0_6 = arith.constant 0 : index
    %6 = vector.load %arg3[%c0_5, %c0_6] : memref<32x96xbf16, #tpu.memory_space<vmem>>, vector<32x96xbf16>
    %cst_7 = arith.constant dense<0.000000e+00> : vector<8x96xf32>
    %7 = tpu.matmul %5, %6, %cst_7 {dimension_numbers = #tpu.dot_dimension_numbers<[1], [0], [0], [1], [0, 0, 1, 1], [], []>} : vector<8x32xbf16>, vector<32x96xbf16>, vector<8x96xf32> -> vector<8x96xf32>
    %8 = tpu.iota {dimensions = array<i32: 0>} : vector<8x8xi32>
    %9 = tpu.iota {dimensions = array<i32: 1>} : vector<8x8xi32>
    %10 = arith.cmpi sge, %8, %9 : vector<8x8xi32>
    %c0_8 = arith.constant 0 : index
    %c0_9 = arith.constant 0 : index
    %11 = vector.load %arg5[%c0_8, %c0_9] : memref<1x128xf32, #tpu.memory_space<vmem>>, vector<1x128xf32>
    %12 = vector.shape_cast %11 : vector<1x128xf32> to vector<1x128xf32>
    %13 = vector.broadcast %12 : vector<1x128xf32> to vector<8x128xf32>
    %14 = vector.extract_strided_slice %7 {offsets = [0, 0], sizes = [8, 8], strides = [1, 1]} : vector<8x96xf32> to vector<8x8xf32>
    %15 = vector.broadcast %0 : f32 to vector<8x8xf32>
    %16 = arith.mulf %14, %15 : vector<8x8xf32>
    %17 = vector.extract_strided_slice %7 {offsets = [0, 32], sizes = [8, 8], strides = [1, 1]} : vector<8x96xf32> to vector<8x8xf32>
    %18 = vector.extract_strided_slice %7 {offsets = [0, 64], sizes = [8, 8], strides = [1, 1]} : vector<8x96xf32> to vector<8x8xf32>
    %19 = arith.truncf %16 : vector<8x8xf32> to vector<8x8xbf16>
    %20 = arith.truncf %17 : vector<8x8xf32> to vector<8x8xbf16>
    %cst_10 = arith.constant dense<0.000000e+00> : vector<8x8xf32>
    %21 = tpu.matmul %19, %20, %cst_10 {dimension_numbers = #tpu.dot_dimension_numbers<[1], [1], [0], [0], [0, 0, 1, 0], [], []>} : vector<8x8xbf16>, vector<8x8xbf16>, vector<8x8xf32> -> vector<8x8xf32>
    %cst_11 = arith.constant 0xFF800000 : f32
    %22 = vector.broadcast %cst_11 : f32 to vector<8x8xf32>
    %23 = arith.select %10, %21, %22 : vector<8x8xi1>, vector<8x8xf32>
    %cst_12 = arith.constant dense<0xFF800000> : vector<8xf32>
    %24 = vector.multi_reduction <maximumf>, %23, %cst_12 [1] : vector<8x8xf32> to vector<8xf32>
    %25 = vector.shape_cast %24 : vector<8xf32> to vector<8x1xf32>
    %26 = vector.broadcast %25 : vector<8x1xf32> to vector<8x8xf32>
    %27 = arith.subf %23, %26 : vector<8x8xf32>
    %28 = math.exp %27 : vector<8x8xf32>
    %cst_13 = arith.constant dense<0.000000e+00> : vector<8xf32>
    %29 = vector.multi_reduction <add>, %28, %cst_13 [1] : vector<8x8xf32> to vector<8xf32>
    %30 = vector.shape_cast %29 : vector<8xf32> to vector<8x1xf32>
    %31 = tpu.reciprocal %30 {approx = true} : vector<8x1xf32> -> vector<8x1xf32>
    %32 = vector.broadcast %31 : vector<8x1xf32> to vector<8x8xf32>
    %33 = arith.mulf %28, %32 : vector<8x8xf32>
    %34 = arith.truncf %33 : vector<8x8xf32> to vector<8x8xbf16>
    %35 = arith.truncf %18 : vector<8x8xf32> to vector<8x8xbf16>
    %cst_14 = arith.constant dense<0.000000e+00> : vector<8x8xf32>
    %36 = tpu.matmul %34, %35, %cst_14 {dimension_numbers = #tpu.dot_dimension_numbers<[1], [0], [0], [1], [0, 0, 1, 1], [], []>} : vector<8x8xbf16>, vector<8x8xbf16>, vector<8x8xf32> -> vector<8x8xf32>
    %37 = arith.truncf %36 : vector<8x8xf32> to vector<8x8xbf16>
    %c0_15 = arith.constant 0 : index
    %c0_16 = arith.constant 0 : index
    %38 = vector.load %arg4[%c0_15, %c0_16] : memref<32x128xbf16, #tpu.memory_space<vmem>>, vector<8x128xbf16>
    %cst_17 = arith.constant dense<0.000000e+00> : vector<8x128xf32>
    %39 = tpu.matmul %37, %38, %cst_17 {dimension_numbers = #tpu.dot_dimension_numbers<[1], [0], [0], [1], [0, 0, 1, 1], [], []>} : vector<8x8xbf16>, vector<8x128xbf16>, vector<8x128xf32> -> vector<8x128xf32>
    %40 = arith.addf %13, %39 : vector<8x128xf32>
    %41 = vector.extract_strided_slice %7 {offsets = [0, 8], sizes = [8, 8], strides = [1, 1]} : vector<8x96xf32> to vector<8x8xf32>
    %42 = vector.broadcast %0 : f32 to vector<8x8xf32>
    %43 = arith.mulf %41, %42 : vector<8x8xf32>
    %44 = vector.extract_strided_slice %7 {offsets = [0, 40], sizes = [8, 8], strides = [1, 1]} : vector<8x96xf32> to vector<8x8xf32>
    %45 = vector.extract_strided_slice %7 {offsets = [0, 72], sizes = [8, 8], strides = [1, 1]} : vector<8x96xf32> to vector<8x8xf32>
    %46 = arith.truncf %43 : vector<8x8xf32> to vector<8x8xbf16>
    %47 = arith.truncf %44 : vector<8x8xf32> to vector<8x8xbf16>
    %cst_18 = arith.constant dense<0.000000e+00> : vector<8x8xf32>
    %48 = tpu.matmul %46, %47, %cst_18 {dimension_numbers = #tpu.dot_dimension_numbers<[1], [1], [0], [0], [0, 0, 1, 0], [], []>} : vector<8x8xbf16>, vector<8x8xbf16>, vector<8x8xf32> -> vector<8x8xf32>
    %cst_19 = arith.constant 0xFF800000 : f32
    %49 = vector.broadcast %cst_19 : f32 to vector<8x8xf32>
    %50 = arith.select %10, %48, %49 : vector<8x8xi1>, vector<8x8xf32>
    %cst_20 = arith.constant dense<0xFF800000> : vector<8xf32>
    %51 = vector.multi_reduction <maximumf>, %50, %cst_20 [1] : vector<8x8xf32> to vector<8xf32>
    %52 = vector.shape_cast %51 : vector<8xf32> to vector<8x1xf32>
    %53 = vector.broadcast %52 : vector<8x1xf32> to vector<8x8xf32>
    %54 = arith.subf %50, %53 : vector<8x8xf32>
    %55 = math.exp %54 : vector<8x8xf32>
    %cst_21 = arith.constant dense<0.000000e+00> : vector<8xf32>
    %56 = vector.multi_reduction <add>, %55, %cst_21 [1] : vector<8x8xf32> to vector<8xf32>
    %57 = vector.shape_cast %56 : vector<8xf32> to vector<8x1xf32>
    %58 = tpu.reciprocal %57 {approx = true} : vector<8x1xf32> -> vector<8x1xf32>
    %59 = vector.broadcast %58 : vector<8x1xf32> to vector<8x8xf32>
    %60 = arith.mulf %55, %59 : vector<8x8xf32>
    %61 = arith.truncf %60 : vector<8x8xf32> to vector<8x8xbf16>
    %62 = arith.truncf %45 : vector<8x8xf32> to vector<8x8xbf16>
    %cst_22 = arith.constant dense<0.000000e+00> : vector<8x8xf32>
    %63 = tpu.matmul %61, %62, %cst_22 {dimension_numbers = #tpu.dot_dimension_numbers<[1], [0], [0], [1], [0, 0, 1, 1], [], []>} : vector<8x8xbf16>, vector<8x8xbf16>, vector<8x8xf32> -> vector<8x8xf32>
    %64 = arith.truncf %63 : vector<8x8xf32> to vector<8x8xbf16>
    %c8 = arith.constant 8 : index
    %c0_23 = arith.constant 0 : index
    %65 = vector.load %arg4[%c8, %c0_23] : memref<32x128xbf16, #tpu.memory_space<vmem>>, vector<8x128xbf16>
    %cst_24 = arith.constant dense<0.000000e+00> : vector<8x128xf32>
    %66 = tpu.matmul %64, %65, %cst_24 {dimension_numbers = #tpu.dot_dimension_numbers<[1], [0], [0], [1], [0, 0, 1, 1], [], []>} : vector<8x8xbf16>, vector<8x128xbf16>, vector<8x128xf32> -> vector<8x128xf32>
    %67 = arith.addf %40, %66 : vector<8x128xf32>
    %68 = vector.extract_strided_slice %7 {offsets = [0, 16], sizes = [8, 8], strides = [1, 1]} : vector<8x96xf32> to vector<8x8xf32>
    %69 = vector.broadcast %0 : f32 to vector<8x8xf32>
    %70 = arith.mulf %68, %69 : vector<8x8xf32>
    %71 = vector.extract_strided_slice %7 {offsets = [0, 48], sizes = [8, 8], strides = [1, 1]} : vector<8x96xf32> to vector<8x8xf32>
    %72 = vector.extract_strided_slice %7 {offsets = [0, 80], sizes = [8, 8], strides = [1, 1]} : vector<8x96xf32> to vector<8x8xf32>
    %73 = arith.truncf %70 : vector<8x8xf32> to vector<8x8xbf16>
    %74 = arith.truncf %71 : vector<8x8xf32> to vector<8x8xbf16>
    %cst_25 = arith.constant dense<0.000000e+00> : vector<8x8xf32>
    %75 = tpu.matmul %73, %74, %cst_25 {dimension_numbers = #tpu.dot_dimension_numbers<[1], [1], [0], [0], [0, 0, 1, 0], [], []>} : vector<8x8xbf16>, vector<8x8xbf16>, vector<8x8xf32> -> vector<8x8xf32>
    %cst_26 = arith.constant 0xFF800000 : f32
    %76 = vector.broadcast %cst_26 : f32 to vector<8x8xf32>
    %77 = arith.select %10, %75, %76 : vector<8x8xi1>, vector<8x8xf32>
    %cst_27 = arith.constant dense<0xFF800000> : vector<8xf32>
    %78 = vector.multi_reduction <maximumf>, %77, %cst_27 [1] : vector<8x8xf32> to vector<8xf32>
    %79 = vector.shape_cast %78 : vector<8xf32> to vector<8x1xf32>
    %80 = vector.broadcast %79 : vector<8x1xf32> to vector<8x8xf32>
    %81 = arith.subf %77, %80 : vector<8x8xf32>
    %82 = math.exp %81 : vector<8x8xf32>
    %cst_28 = arith.constant dense<0.000000e+00> : vector<8xf32>
    %83 = vector.multi_reduction <add>, %82, %cst_28 [1] : vector<8x8xf32> to vector<8xf32>
    %84 = vector.shape_cast %83 : vector<8xf32> to vector<8x1xf32>
    %85 = tpu.reciprocal %84 {approx = true} : vector<8x1xf32> -> vector<8x1xf32>
    %86 = vector.broadcast %85 : vector<8x1xf32> to vector<8x8xf32>
    %87 = arith.mulf %82, %86 : vector<8x8xf32>
    %88 = arith.truncf %87 : vector<8x8xf32> to vector<8x8xbf16>
    %89 = arith.truncf %72 : vector<8x8xf32> to vector<8x8xbf16>
    %cst_29 = arith.constant dense<0.000000e+00> : vector<8x8xf32>
    %90 = tpu.matmul %88, %89, %cst_29 {dimension_numbers = #tpu.dot_dimension_numbers<[1], [0], [0], [1], [0, 0, 1, 1], [], []>} : vector<8x8xbf16>, vector<8x8xbf16>, vector<8x8xf32> -> vector<8x8xf32>
    %91 = arith.truncf %90 : vector<8x8xf32> to vector<8x8xbf16>
    %c16 = arith.constant 16 : index
    %c0_30 = arith.constant 0 : index
    %92 = vector.load %arg4[%c16, %c0_30] : memref<32x128xbf16, #tpu.memory_space<vmem>>, vector<8x128xbf16>
    %cst_31 = arith.constant dense<0.000000e+00> : vector<8x128xf32>
    %93 = tpu.matmul %91, %92, %cst_31 {dimension_numbers = #tpu.dot_dimension_numbers<[1], [0], [0], [1], [0, 0, 1, 1], [], []>} : vector<8x8xbf16>, vector<8x128xbf16>, vector<8x128xf32> -> vector<8x128xf32>
    %94 = arith.addf %67, %93 : vector<8x128xf32>
    %95 = vector.extract_strided_slice %7 {offsets = [0, 24], sizes = [8, 8], strides = [1, 1]} : vector<8x96xf32> to vector<8x8xf32>
    %96 = vector.broadcast %0 : f32 to vector<8x8xf32>
    %97 = arith.mulf %95, %96 : vector<8x8xf32>
    %98 = vector.extract_strided_slice %7 {offsets = [0, 56], sizes = [8, 8], strides = [1, 1]} : vector<8x96xf32> to vector<8x8xf32>
    %99 = vector.extract_strided_slice %7 {offsets = [0, 88], sizes = [8, 8], strides = [1, 1]} : vector<8x96xf32> to vector<8x8xf32>
    %100 = arith.truncf %97 : vector<8x8xf32> to vector<8x8xbf16>
    %101 = arith.truncf %98 : vector<8x8xf32> to vector<8x8xbf16>
    %cst_32 = arith.constant dense<0.000000e+00> : vector<8x8xf32>
    %102 = tpu.matmul %100, %101, %cst_32 {dimension_numbers = #tpu.dot_dimension_numbers<[1], [1], [0], [0], [0, 0, 1, 0], [], []>} : vector<8x8xbf16>, vector<8x8xbf16>, vector<8x8xf32> -> vector<8x8xf32>
    %cst_33 = arith.constant 0xFF800000 : f32
    %103 = vector.broadcast %cst_33 : f32 to vector<8x8xf32>
    %104 = arith.select %10, %102, %103 : vector<8x8xi1>, vector<8x8xf32>
    %cst_34 = arith.constant dense<0xFF800000> : vector<8xf32>
    %105 = vector.multi_reduction <maximumf>, %104, %cst_34 [1] : vector<8x8xf32> to vector<8xf32>
    %106 = vector.shape_cast %105 : vector<8xf32> to vector<8x1xf32>
    %107 = vector.broadcast %106 : vector<8x1xf32> to vector<8x8xf32>
    %108 = arith.subf %104, %107 : vector<8x8xf32>
    %109 = math.exp %108 : vector<8x8xf32>
    %cst_35 = arith.constant dense<0.000000e+00> : vector<8xf32>
    %110 = vector.multi_reduction <add>, %109, %cst_35 [1] : vector<8x8xf32> to vector<8xf32>
    %111 = vector.shape_cast %110 : vector<8xf32> to vector<8x1xf32>
    %112 = tpu.reciprocal %111 {approx = true} : vector<8x1xf32> -> vector<8x1xf32>
    %113 = vector.broadcast %112 : vector<8x1xf32> to vector<8x8xf32>
    %114 = arith.mulf %109, %113 : vector<8x8xf32>
    %115 = arith.truncf %114 : vector<8x8xf32> to vector<8x8xbf16>
    %116 = arith.truncf %99 : vector<8x8xf32> to vector<8x8xbf16>
    %cst_36 = arith.constant dense<0.000000e+00> : vector<8x8xf32>
    %117 = tpu.matmul %115, %116, %cst_36 {dimension_numbers = #tpu.dot_dimension_numbers<[1], [0], [0], [1], [0, 0, 1, 1], [], []>} : vector<8x8xbf16>, vector<8x8xbf16>, vector<8x8xf32> -> vector<8x8xf32>
    %118 = arith.truncf %117 : vector<8x8xf32> to vector<8x8xbf16>
    %c24 = arith.constant 24 : index
    %c0_37 = arith.constant 0 : index
    %119 = vector.load %arg4[%c24, %c0_37] : memref<32x128xbf16, #tpu.memory_space<vmem>>, vector<8x128xbf16>
    %cst_38 = arith.constant dense<0.000000e+00> : vector<8x128xf32>
    %120 = tpu.matmul %118, %119, %cst_38 {dimension_numbers = #tpu.dot_dimension_numbers<[1], [0], [0], [1], [0, 0, 1, 1], [], []>} : vector<8x8xbf16>, vector<8x128xbf16>, vector<8x128xf32> -> vector<8x128xf32>
    %121 = arith.addf %94, %120 : vector<8x128xf32>
    %c0_39 = arith.constant 0 : index
    %c0_40 = arith.constant 0 : index
    %c0_41 = arith.constant 0 : index
    %122 = vector.load %arg6[%c0_39, %c0_40, %c0_41] : memref<1x8x128xf32, #tpu.memory_space<vmem>>, vector<1x8x128xf32>
    %123 = vector.shape_cast %122 : vector<1x8x128xf32> to vector<8x128xf32>
    %124 = vector.shape_cast %121 : vector<8x128xf32> to vector<1x8x128xf32>
    tpu.vector_store %arg6[%c0_39, %c0_40, %c0_41], %124 {strides = array<i32>} : memref<1x8x128xf32, #tpu.memory_space<vmem>>, vector<1x8x128xf32>,
    return
  }
  func.func @transform_0(%arg0: i32) -> (i32, i32, i32) {
    %c0_i32 = arith.constant 0 : i32
    %c0_i32_0 = arith.constant 0 : i32
    %c0_i32_1 = arith.constant 0 : i32
    return %arg0, %c0_i32, %c0_i32_0 : i32, i32, i32
  }
  func.func @transform_1(%arg0: i32) -> (i32, i32) {
    %c0_i32 = arith.constant 0 : i32
    %c0_i32_0 = arith.constant 0 : i32
    %c0_i32_1 = arith.constant 0 : i32
    return %c0_i32, %c0_i32_0 : i32, i32
  }
  func.func @transform_2(%arg0: i32) -> (i32, i32) {
    %c0_i32 = arith.constant 0 : i32
    %c0_i32_0 = arith.constant 0 : i32
    %c0_i32_1 = arith.constant 0 : i32
    return %c0_i32, %c0_i32_0 : i32, i32
  }
  func.func @transform_3(%arg0: i32) -> (i32, i32) {
    %c0_i32 = arith.constant 0 : i32
    %c0_i32_0 = arith.constant 0 : i32
    %c0_i32_1 = arith.constant 0 : i32
    return %c0_i32, %c0_i32_0 : i32, i32
  }
  func.func @transform_4(%arg0: i32) -> (i32, i32) {
    %c0_i32 = arith.constant 0 : i32
    %c0_i32_0 = arith.constant 0 : i32
    %c0_i32_1 = arith.constant 0 : i32
    return %c0_i32, %c0_i32_0 : i32, i32
  }
  func.func @transform_5(%arg0: i32) -> (i32, i32, i32) {
    %c0_i32 = arith.constant 0 : i32
    %c0_i32_0 = arith.constant 0 : i32
    %c0_i32_1 = arith.constant 0 : i32
    return %arg0, %c0_i32, %c0_i32_0 : i32, i32, i32
  }
}

</mosaic_0001>

<llo_original>
// kernel: gpt_forward.1
$region0: #{gpt_forward.1}
  #allocation0 [shape = 'u32[]', space=smem, size = 0x4, offset = 0x4, fixed_abs, tag = 'smem constant byte address 0x4 - core index']
  #allocation1 [shape = 'u32[72,128]{1,0:T(1,128)}', space=vmem, size = 0x9000, scoped, tag = 'internal scratch']
  %s0 = inlined_call_operand.vmem [shape: f32[2,8,32], index: 0, kind: input, shape index: {}]
  %s1 = inlined_call_operand.vmem [shape: f32[8,32], index: 1, kind: input, shape index: {}]
  %s2 = inlined_call_operand.vmem [shape: bf16[32,96], index: 2, kind: input, shape index: {}]
  %s3 = inlined_call_operand.vmem [shape: bf16[32,128], index: 3, kind: input, shape index: {}]
  %s4 = inlined_call_operand.vmem [shape: f32[1,128], index: 4, kind: input, shape index: {}]
  %s5 = inlined_call_operand.vmem [shape: f32[2,8,128], index: 5, kind: output, shape index: {}]
  %s6 = sld [smem:[#allocation0]]
  $region53: #{gpt_forward.1} parent=0
    _
  %s8 = ssub.s32 1, %s6
  %s9 = scalar_select 0, %s8, %s6
  loop: start=0, step=1, limit=4
  $region2: #{gpt_forward.1} parent=0 // loop_pre_header
    _
  $region3: #{gpt_forward.1} parent=0 // loop_header
    %s11 = sphi 0, %s15
    %p12 = scmp.ge.s32.totalorder %s11, 4
    %s21 = sphi 0, %s23
    %s24 = sphi 0, %s21
    %s25 = sphi 0, %s24
    %s41 = sphi 0, %s25
    %s45 = sphi 0, %s45
    %s47 = sphi 0, %s45
    %s48 = sphi 0, %s47
    %s62 = sphi 0, %s48
    %s66 = sphi 0, %s66
    %s68 = sphi 0, %s66
    %s69 = sphi 0, %s68
    %s83 = sphi 0, %s69
    %s87 = sphi 0, %s87
    %s89 = sphi 0, %s87
    %s90 = sphi 0, %s89
    %s104 = sphi 0, %s90
    %s108 = sphi 0, %s108
    %s110 = sphi 0, %s108
    %s111 = sphi 0, %s110
    %s125 = sphi 0, %s111
    %s131 = sphi 0, %s133
    %s134 = sphi 0, %s131
    %s135 = sphi 0, %s134
    %s151 = sphi 0, %s135
  $region4: #{gpt_forward.1} parent=0 // loop_header_branch
    %14 = sbr.rel (%p12) target = $region8
  $region5: #{gpt_forward.1} parent=0 // loop_body
    %s16 = ssub.s32 %s11, 1
    %s17 = ssub.s32 %s11, 2
    %s18 = sadd.s32 %s11, 1
    %s19 = ssub.s32 %s11, %s18
    %p20 = scmp.eq.s32.totalorder %s19, 0
    %s22 = sadd.s32 %s21, 1
    %s23 = scalar_select %p20, %s21, %s22
    %p26 = pneg %p20
    %p27 = scmp.eq.s32.totalorder %s11, 1
    %p28 = por %p26, %p27
    %p29 = scmp.ne.s32.totalorder %s21, %s24
    %p30 = scmp.eq.s32.totalorder %s11, 0
    %p31 = por %p29, %p30
    %p32 = scmp.ne.s32.totalorder %s21, %s24
    %p33 = scmp.eq.s32.totalorder %s16, 1
    %p34 = por %p32, %p33
    %p35 = scmp.ne.s32.totalorder %s24, %s25
    %p36 = scmp.eq.s32.totalorder %s16, 0
    %p37 = por %p35, %p36
    %p38 = scmp.ne.s32.totalorder %s24, %s25
    %p39 = scmp.eq.s32.totalorder %s17, 1
    %p40 = por %p38, %p39
    %p42 = scmp.ne.s32.totalorder %s25, %s41
    %p43 = scmp.eq.s32.totalorder %s17, 0
    %p44 = por %p42, %p43
    %s46 = sadd.s32 %s45, 1
    %p49 = scmp.eq.s32.totalorder %s11, 1
    %p50 = scmp.ne.s32.totalorder %s45, %s47
    %p51 = scmp.eq.s32.totalorder %s11, 0
    %p52 = por %p50, %p51
    %p53 = scmp.ne.s32.totalorder %s45, %s47
    %p54 = scmp.eq.s32.totalorder %s16, 1
    %p55 = por %p53, %p54
    %p56 = scmp.ne.s32.totalorder %s47, %s48
    %p57 = scmp.eq.s32.totalorder %s16, 0
    %p58 = por %p56, %p57
    %p59 = scmp.ne.s32.totalorder %s47, %s48
    %p60 = scmp.eq.s32.totalorder %s17, 1
    %p61 = por %p59, %p60
    %p63 = scmp.ne.s32.totalorder %s48, %s62
    %p64 = scmp.eq.s32.totalorder %s17, 0
    %p65 = por %p63, %p64
    %s67 = sadd.s32 %s66, 1
    %p70 = scmp.eq.s32.totalorder %s11, 1
    %p71 = scmp.ne.s32.totalorder %s66, %s68
    %p72 = scmp.eq.s32.totalorder %s11, 0
    %p73 = por %p71, %p72
    %p74 = scmp.ne.s32.totalorder %s66, %s68
    %p75 = scmp.eq.s32.totalorder %s16, 1
    %p76 = por %p74, %p75
    %p77 = scmp.ne.s32.totalorder %s68, %s69
    %p78 = scmp.eq.s32.totalorder %s16, 0
    %p79 = por %p77, %p78
    %p80 = scmp.ne.s32.totalorder %s68, %s69
    %p81 = scmp.eq.s32.totalorder %s17, 1
    %p82 = por %p80, %p81
    %p84 = scmp.ne.s32.totalorder %s69, %s83
    %p85 = scmp.eq.s32.totalorder %s17, 0
    %p86 = por %p84, %p85
    %s88 = sadd.s32 %s87, 1
    %p91 = scmp.eq.s32.totalorder %s11, 1
    %p92 = scmp.ne.s32.totalorder %s87, %s89
    %p93 = scmp.eq.s32.totalorder %s11, 0
    %p94 = por %p92, %p93
    %p95 = scmp.ne.s32.totalorder %s87, %s89
    %p96 = scmp.eq.s32.totalorder %s16, 1
    %p97 = por %p95, %p96
    %p98 = scmp.ne.s32.totalorder %s89, %s90
    %p99 = scmp.eq.s32.totalorder %s16, 0
    %p100 = por %p98, %p99
    %p101 = scmp.ne.s32.totalorder %s89, %s90
    %p102 = scmp.eq.s32.totalorder %s17, 1
    %p103 = por %p101, %p102
    %p105 = scmp.ne.s32.totalorder %s90, %s104
    %p106 = scmp.eq.s32.totalorder %s17, 0
    %p107 = por %p105, %p106
    %s109 = sadd.s32 %s108, 1
    %p112 = scmp.eq.s32.totalorder %s11, 1
    %p113 = scmp.ne.s32.totalorder %s108, %s110
    %p114 = scmp.eq.s32.totalorder %s11, 0
    %p115 = por %p113, %p114
    %p116 = scmp.ne.s32.totalorder %s108, %s110
    %p117 = scmp.eq.s32.totalorder %s16, 1
    %p118 = por %p116, %p117
    %p119 = scmp.ne.s32.totalorder %s110, %s111
    %p120 = scmp.eq.s32.totalorder %s16, 0
    %p121 = por %p119, %p120
    %p122 = scmp.ne.s32.totalorder %s110, %s111
    %p123 = scmp.eq.s32.totalorder %s17, 1
    %p124 = por %p122, %p123
    %p126 = scmp.ne.s32.totalorder %s111, %s125
    %p127 = scmp.eq.s32.totalorder %s17, 0
    %p128 = por %p126, %p127
    %s129 = ssub.s32 %s11, %s18
    %p130 = scmp.eq.s32.totalorder %s129, 0
    %s132 = sadd.s32 %s131, 1
    %s133 = scalar_select %p130, %s131, %s132
    %p136 = pneg %p130
    %p137 = scmp.eq.s32.totalorder %s11, 1
    %p138 = por %p136, %p137
    %p139 = scmp.ne.s32.totalorder %s131, %s134
    %p140 = scmp.eq.s32.totalorder %s11, 0
    %p141 = por %p139, %p140
    %p142 = scmp.ne.s32.totalorder %s131, %s134
    %p143 = scmp.eq.s32.totalorder %s16, 1
    %p144 = por %p142, %p143
    %p145 = scmp.ne.s32.totalorder %s134, %s135
    %p146 = scmp.eq.s32.totalorder %s16, 0
    %p147 = por %p145, %p146
    %p148 = scmp.ne.s32.totalorder %s134, %s135
    %p149 = scmp.eq.s32.totalorder %s17, 1
    %p150 = por %p148, %p149
    %p152 = scmp.ne.s32.totalorder %s135, %s151
    %p153 = scmp.eq.s32.totalorder %s17, 0
    %p154 = por %p152, %p153
    %p155 = scmp.le.s32.totalorder 1, %s11
    %p156 = scmp.lt.s32.totalorder %s11, 3
    %p157 = pnand %p155, %p156
    %p158 = pneg %p157
    // Predicated region
    $region9: #{gpt_forward.1} parent=5 // pred_check
      _
    $region10: #{gpt_forward.1} parent=5 // pred_check_branch
      %160 = sbr.rel (%p157) target = $region12
    $region11: #{gpt_forward.1} parent=5 // pred_region
      %s161 = ssub.s32 %s11, 1
      // Predicated region
      $region13: #{gpt_forward.1} parent=11 // pred_check
        %p162 = pneg %p58
      $region14: #{gpt_forward.1} parent=11 // pred_check_branch
        %164 = sbr.rel (%p162) target = $region16
      $region15: #{gpt_forward.1} parent=11 // pred_region
        _
      $region16: #{gpt_forward.1} parent=11 // pred_fallthru
        _
      // Predicated region
      $region17: #{gpt_forward.1} parent=11 // pred_check
        %p165 = pneg %p79
      $region18: #{gpt_forward.1} parent=11 // pred_check_branch
        %167 = sbr.rel (%p165) target = $region20
      $region19: #{gpt_forward.1} parent=11 // pred_region
        _
      $region20: #{gpt_forward.1} parent=11 // pred_fallthru
        _
      // Predicated region
      $region21: #{gpt_forward.1} parent=11 // pred_check
        %p168 = pneg %p100
      $region22: #{gpt_forward.1} parent=11 // pred_check_branch
        %170 = sbr.rel (%p168) target = $region24
      $region23: #{gpt_forward.1} parent=11 // pred_region
        _
      $region24: #{gpt_forward.1} parent=11 // pred_fallthru
        _
      // Predicated region
      $region25: #{gpt_forward.1} parent=11 // pred_check
        %p171 = pneg %p121
      $region26: #{gpt_forward.1} parent=11 // pred_check_branch
        %173 = sbr.rel (%p171) target = $region28
      $region27: #{gpt_forward.1} parent=11 // pred_region
        _
      $region28: #{gpt_forward.1} parent=11 // pred_fallthru
        _
    $region12: #{gpt_forward.1} parent=5 // pred_fallthru
      _
    %p174 = scmp.lt.s32.totalorder %s11, 2
    // Predicated region
    $region29: #{gpt_forward.1} parent=5 // pred_check
      %p175 = pneg %p174
    $region30: #{gpt_forward.1} parent=5 // pred_check_branch
      %177 = sbr.rel (%p175) target = $region32
    $region31: #{gpt_forward.1} parent=5 // pred_region
      // Predicated region
      $region33: #{gpt_forward.1} parent=31 // pred_check
        %p178 = pneg %p31
      $region34: #{gpt_forward.1} parent=31 // pred_check_branch
        %180 = sbr.rel (%p178) target = $region36
      $region35: #{gpt_forward.1} parent=31 // pred_region
        %p181 = scmp.lt.s32.totalorder %s11, 1
        %s182 = scalar_select %p181, %s11, 1
        %s183 = smul.addr %s182, 8
        %s184 = scalar_lea.vmem %s0, %s183
      $region36: #{gpt_forward.1} parent=31 // pred_fallthru
        _
    $region32: #{gpt_forward.1} parent=5 // pred_fallthru
      _
    %p185 = scmp.le.s32.totalorder 1, %s11
    %p186 = scmp.lt.s32.totalorder %s11, 3
    %p187 = pnand %p185, %p186
    %p188 = pneg %p187
    // Predicated region
    $region37: #{gpt_forward.1} parent=5 // pred_check
      _
    $region38: #{gpt_forward.1} parent=5 // pred_check_branch
      %190 = sbr.rel (%p187) target = $region40
    $region39: #{gpt_forward.1} parent=5 // pred_region
      %s191 = ssub.s32 %s11, 1
      %p192 = scmp.lt.s32.totalorder %s16, 1
      %s193 = scalar_select %p192, %s16, 1
      %s194 = smul.addr %s193, 8
      %s195 = scalar_lea.vmem %s0, %s194
      %p196 = pneg %p37
      %p197 = pneg %p34
      %p198 = pneg %p58
      %p199 = pneg %p55
      %p200 = pneg %p79
      %p201 = pneg %p76
      %p202 = pneg %p100
      %p203 = pneg %p97
      %p204 = pneg %p121
      %p205 = pneg %p118
      %p206 = pneg %p147
      %p207 = pneg %p144
      %p208 = scmp.lt.s32.totalorder %s16, 1
      %s209 = scalar_select %p208, %s16, 1
      %s210 = smul.addr %s209, 8
      %s211 = scalar_lea.vmem %s5, %s210
      %p212 = scmp.lt.s32.totalorder %s16, 1
      %s213 = scalar_select %p212, %s16, 1
      %s214 = smul.addr %s213, 8
      %s215 = scalar_lea.vmem %s0, %s214
      %p216 = scmp.lt.s32.totalorder %s16, 1
      %s217 = scalar_select %p216, %s16, 1
      %s218 = smul.addr %s217, 8
      %s219 = scalar_lea.vmem %s5, %s218
      %v221 = vld [vmem:[%s215] sm:$0xff]
      %v222 = vld [vmem:[%s1] sm:$0xff]
      %v223 = vadd.f32 %v221, %v222
      %v224 = vpack.c.bf16 %v223, %v223
      %v225 = vld [vmem:[%s2] sm:$0xf]
      %v226 = vld [vmem:[%s2 + $0x4] sm:$0xf]
      %v227 = vld [vmem:[%s2 + $0x8] sm:$0xf]
      %v228 = vld [vmem:[%s2 + $0xc] sm:$0xf]
      %v233 = vunpack.c.l.b16 %v225
      %v234 = vunpack.c.l.b16 %v226
      %v235 = vunpack.c.l.b16 %v227
      %v236 = vunpack.c.l.b16 %v228
      %v237 = vpack.c.b16 %v234, %v233
      %v238 = vpack.c.b16 %v236, %v235
      %vm241 = vcmask 261120
      %v243 = vsel %vm241, %v224, 0
      %245 = vmatpush.bf16.msra.mxu0 0
      %246 = vmatpush.bf16.msra.mxu0 0
      %247 = vmatpush.bf16.msra.mxu0 0
      %248 = vmatpush.bf16.msra.mxu0 0
      %249 = vmatpush.bf16.msra.mxu0 0
      %250 = vmatpush.bf16.msra.mxu0 0
      %251 = vmatpush.bf16.msra.mxu0 %v238
      %252 = vmatpush.bf16.msra.mxu0 %v237
      %253 = vmatmul.bf16.gmra.mxu0 %v243
      %v254 = vpop.f32.mrf.mxu0
      %v255 = vadd.f32 0.0, %v254
      %v256 = vpop.f32.mrf.mxu0
      %257 = vdwg.mxu0
      %v258 = vlaneseq
      %v259 = vshrl.u32 %v258, 7
      %v260 = vlaneseq
      %v261 = vand.u32 %v260, 127
      %vm262 = vcmp.ge.s32.totalorder %v259, %v261
      %v263 = vld [vmem:[%s4] sm:$0x1]
      %v265 = vperm.slane %v263, 0
      %v267 = vmul.f32 %v255, 0.17677669
      %v268 = vpack.c.bf16 %v267, %v267
      %v269 = vpack.c.bf16 %v255, %v255
      %271 = vrot.lane.b32.xlu0 %v269, 96
      %v272 = vpop.permute.xlu0 %271
      %vm273 = vcmask 64512
      %v275 = vsel %vm273, %v268, 0
      %v278 = vsel %vm273, %v272, 0
      %280 = vmatpush.bf16.xpose.msra.mxu0 0
      %281 = vmatpush.bf16.xpose.msra.mxu0 0
      %282 = vmatpush.bf16.xpose.msra.mxu0 0
      %283 = vmatpush.bf16.xpose.msra.mxu0 0
      %284 = vmatpush.bf16.xpose.msra.mxu0 0
      %285 = vmatpush.bf16.xpose.msra.mxu0 0
      %286 = vmatpush.bf16.xpose.msra.mxu0 0
      %287 = vmatpush.bf16.xpose.msra.mxu0 %v278
      %288 = vmatmul.bf16.gmra.mxu0 %v275
      %v289 = vpop.f32.mrf.mxu0
      %v290 = vadd.f32 0.0, %v289
      %v291 = vpop.f32.mrf.mxu0
      %292 = vdwg.mxu0
      %v293 = vsel %vm262, %v290, -inf
      %v294 = vsel %vm273, %v293, -inf
      %295 = vmax.xlane.f32.xlu0 %v294
      %v296 = vpop.xlane.xlu0 %295
      %v297 = vsub.f32 %v293, %v296
      %v298 = vmul.f32 %v297, 1.442695
      %v299 = vpow.pop %v298
      %v300 = vsel %vm273, %v299, 0.0
      %301 = vadd.xlane.f32.xlu0 %v300
      %v302 = vpop.xlane.xlu0 %301
      %v303 = vrcp.pop %v302
      %v304 = vmul.f32 %v299, %v303
      %v305 = vpack.c.bf16 %v304, %v304
      %306 = vrot.lane.b32.xlu0 %v269, 64
      %v307 = vpop.permute.xlu0 %306
      %v309 = vsel %vm273, %v305, 0
      %vm311 = vcmask 1043456
      %v313 = vsel %vm311, %v307, 0
      %315 = vmatpush.bf16.msra.mxu0 0
      %316 = vmatpush.bf16.msra.mxu0 0
      %317 = vmatpush.bf16.msra.mxu0 0
      %318 = vmatpush.bf16.msra.mxu0 0
      %319 = vmatpush.bf16.msra.mxu0 0
      %320 = vmatpush.bf16.msra.mxu0 0
      %321 = vmatpush.bf16.msra.mxu0 0
      %322 = vmatpush.bf16.msra.mxu0 %v313
      %323 = vmatmul.bf16.gmra.mxu0 %v309
      %v324 = vpop.f32.mrf.mxu0
      %v325 = vadd.f32 0.0, %v324
      %v326 = vpop.f32.mrf.mxu0
      %327 = vdwg.mxu0
      %v328 = vpack.c.bf16 %v325, %v325
      %v329 = vld [vmem:[%s3] sm:$0xf]
      %v331 = vsel %vm273, %v328, 0
      %v334 = vsel %vm311, %v329, 0
      %336 = vmatpush.bf16.msra.mxu0 0
      %337 = vmatpush.bf16.msra.mxu0 0
      %338 = vmatpush.bf16.msra.mxu0 0
      %339 = vmatpush.bf16.msra.mxu0 0
      %340 = vmatpush.bf16.msra.mxu0 0
      %341 = vmatpush.bf16.msra.mxu0 0
      %342 = vmatpush.bf16.msra.mxu0 0
      %343 = vmatpush.bf16.msra.mxu0 %v334
      %344 = vmatmul.bf16.gmra.mxu0 %v331
      %v345 = vpop.f32.mrf.mxu0
      %v346 = vadd.f32 0.0, %v345
      %v347 = vpop.f32.mrf.mxu0
      %348 = vdwg.mxu0
      %v349 = vadd.f32 %v265, %v346
      %351 = vrot.lane.b32.xlu0 %v268, 120
      %v352 = vpop.permute.xlu0 %351
      %353 = vrot.lane.b32.xlu0 %v269, 88
      %v354 = vpop.permute.xlu0 %353
      %v356 = vsel %vm273, %v352, 0
      %v359 = vsel %vm273, %v354, 0
      %361 = vmatpush.bf16.xpose.msra.mxu0 0
      %362 = vmatpush.bf16.xpose.msra.mxu0 0
      %363 = vmatpush.bf16.xpose.msra.mxu0 0
      %364 = vmatpush.bf16.xpose.msra.mxu0 0
      %365 = vmatpush.bf16.xpose.msra.mxu0 0
      %366 = vmatpush.bf16.xpose.msra.mxu0 0
      %367 = vmatpush.bf16.xpose.msra.mxu0 0
      %368 = vmatpush.bf16.xpose.msra.mxu0 %v359
      %369 = vmatmul.bf16.gmra.mxu0 %v356
      %v370 = vpop.f32.mrf.mxu0
      %v371 = vadd.f32 0.0, %v370
      %v372 = vpop.f32.mrf.mxu0
      %373 = vdwg.mxu0
      %v374 = vsel %vm262, %v371, -inf
      %v375 = vsel %vm273, %v374, -inf
      %376 = vmax.xlane.f32.xlu0 %v375
      %v377 = vpop.xlane.xlu0 %376
      %v378 = vsub.f32 %v374, %v377
      %v379 = vmul.f32 %v378, 1.442695
      %v380 = vpow.pop %v379
      %v381 = vsel %vm273, %v380, 0.0
      %382 = vadd.xlane.f32.xlu0 %v381
      %v383 = vpop.xlane.xlu0 %382
      %v384 = vrcp.pop %v383
      %v385 = vmul.f32 %v380, %v384
      %v386 = vpack.c.bf16 %v385, %v385
      %387 = vrot.lane.b32.xlu0 %v269, 56
      %v388 = vpop.permute.xlu0 %387
      %v390 = vsel %vm273, %v386, 0
      %v393 = vsel %vm311, %v388, 0
      %395 = vmatpush.bf16.msra.mxu0 0
      %396 = vmatpush.bf16.msra.mxu0 0
      %397 = vmatpush.bf16.msra.mxu0 0
      %398 = vmatpush.bf16.msra.mxu0 0
      %399 = vmatpush.bf16.msra.mxu0 0
      %400 = vmatpush.bf16.msra.mxu0 0
      %401 = vmatpush.bf16.msra.mxu0 0
      %402 = vmatpush.bf16.msra.mxu0 %v393
      %403 = vmatmul.bf16.gmra.mxu0 %v390
      %v404 = vpop.f32.mrf.mxu0
      %v405 = vadd.f32 0.0, %v404
      %v406 = vpop.f32.mrf.mxu0
      %407 = vdwg.mxu0
      %v408 = vpack.c.bf16 %v405, %v405
      %v409 = vld [vmem:[%s3 + $0x4] sm:$0xf]
      %v411 = vsel %vm273, %v408, 0
      %v414 = vsel %vm311, %v409, 0
      %416 = vmatpush.bf16.msra.mxu0 0
      %417 = vmatpush.bf16.msra.mxu0 0
      %418 = vmatpush.bf16.msra.mxu0 0
      %419 = vmatpush.bf16.msra.mxu0 0
      %420 = vmatpush.bf16.msra.mxu0 0
      %421 = vmatpush.bf16.msra.mxu0 0
      %422 = vmatpush.bf16.msra.mxu0 0
      %423 = vmatpush.bf16.msra.mxu0 %v414
      %424 = vmatmul.bf16.gmra.mxu0 %v411
      %v425 = vpop.f32.mrf.mxu0
      %v426 = vadd.f32 0.0, %v425
      %v427 = vpop.f32.mrf.mxu0
      %428 = vdwg.mxu0
      %v429 = vadd.f32 %v349, %v426
      %430 = vrot.lane.b32.xlu0 %v268, 112
      %v431 = vpop.permute.xlu0 %430
      %432 = vrot.lane.b32.xlu0 %v269, 80
      %v433 = vpop.permute.xlu0 %432
      %v435 = vsel %vm273, %v431, 0
      %v438 = vsel %vm273, %v433, 0
      %440 = vmatpush.bf16.xpose.msra.mxu0 0
      %441 = vmatpush.bf16.xpose.msra.mxu0 0
      %442 = vmatpush.bf16.xpose.msra.mxu0 0
      %443 = vmatpush.bf16.xpose.msra.mxu0 0
      %444 = vmatpush.bf16.xpose.msra.mxu0 0
      %445 = vmatpush.bf16.xpose.msra.mxu0 0
      %446 = vmatpush.bf16.xpose.msra.mxu0 0
      %447 = vmatpush.bf16.xpose.msra.mxu0 %v438
      %448 = vmatmul.bf16.gmra.mxu0 %v435
      %v449 = vpop.f32.mrf.mxu0
      %v450 = vadd.f32 0.0, %v449
      %v451 = vpop.f32.mrf.mxu0
      %452 = vdwg.mxu0
      %v453 = vsel %vm262, %v450, -inf
      %v454 = vsel %vm273, %v453, -inf
      %455 = vmax.xlane.f32.xlu0 %v454
      %v456 = vpop.xlane.xlu0 %455
      %v457 = vsub.f32 %v453, %v456
      %v458 = vmul.f32 %v457, 1.442695
      %v459 = vpow.pop %v458
      %v460 = vsel %vm273, %v459, 0.0
      %461 = vadd.xlane.f32.xlu0 %v460
      %v462 = vpop.xlane.xlu0 %461
      %v463 = vrcp.pop %v462
      %v464 = vmul.f32 %v459, %v463
      %v465 = vpack.c.bf16 %v464, %v464
      %466 = vrot.lane.b32.xlu0 %v269, 48
      %v467 = vpop.permute.xlu0 %466
      %v469 = vsel %vm273, %v465, 0
      %v472 = vsel %vm311, %v467, 0
      %474 = vmatpush.bf16.msra.mxu0 0
      %475 = vmatpush.bf16.msra.mxu0 0
      %476 = vmatpush.bf16.msra.mxu0 0
      %477 = vmatpush.bf16.msra.mxu0 0
      %478 = vmatpush.bf16.msra.mxu0 0
      %479 = vmatpush.bf16.msra.mxu0 0
      %480 = vmatpush.bf16.msra.mxu0 0
      %481 = vmatpush.bf16.msra.mxu0 %v472
      %482 = vmatmul.bf16.gmra.mxu0 %v469
      %v483 = vpop.f32.mrf.mxu0
      %v484 = vadd.f32 0.0, %v483
      %v485 = vpop.f32.mrf.mxu0
      %486 = vdwg.mxu0
      %v487 = vpack.c.bf16 %v484, %v484
      %v488 = vld [vmem:[%s3 + $0x8] sm:$0xf]
      %v490 = vsel %vm273, %v487, 0
      %v493 = vsel %vm311, %v488, 0
      %495 = vmatpush.bf16.msra.mxu0 0
      %496 = vmatpush.bf16.msra.mxu0 0
      %497 = vmatpush.bf16.msra.mxu0 0
      %498 = vmatpush.bf16.msra.mxu0 0
      %499 = vmatpush.bf16.msra.mxu0 0
      %500 = vmatpush.bf16.msra.mxu0 0
      %501 = vmatpush.bf16.msra.mxu0 0
      %502 = vmatpush.bf16.msra.mxu0 %v493
      %503 = vmatmul.bf16.gmra.mxu0 %v490
      %v504 = vpop.f32.mrf.mxu0
      %v505 = vadd.f32 0.0, %v504
      %v506 = vpop.f32.mrf.mxu0
      %507 = vdwg.mxu0
      %v508 = vadd.f32 %v429, %v505
      %509 = vrot.lane.b32.xlu0 %v268, 104
      %v510 = vpop.permute.xlu0 %509
      %511 = vrot.lane.b32.xlu0 %v269, 72
      %v512 = vpop.permute.xlu0 %511
      %v514 = vsel %vm273, %v510, 0
      %v517 = vsel %vm273, %v512, 0
      %519 = vmatpush.bf16.xpose.msra.mxu0 0
      %520 = vmatpush.bf16.xpose.msra.mxu0 0
      %521 = vmatpush.bf16.xpose.msra.mxu0 0
      %522 = vmatpush.bf16.xpose.msra.mxu0 0
      %523 = vmatpush.bf16.xpose.msra.mxu0 0
      %524 = vmatpush.bf16.xpose.msra.mxu0 0
      %525 = vmatpush.bf16.xpose.msra.mxu0 0
      %526 = vmatpush.bf16.xpose.msra.mxu0 %v517
      %527 = vmatmul.bf16.gmra.mxu0 %v514
      %v528 = vpop.f32.mrf.mxu0
      %v529 = vadd.f32 0.0, %v528
      %v530 = vpop.f32.mrf.mxu0
      %531 = vdwg.mxu0
      %v532 = vsel %vm262, %v529, -inf
      %v533 = vsel %vm273, %v532, -inf
      %534 = vmax.xlane.f32.xlu0 %v533
      %v535 = vpop.xlane.xlu0 %534
      %v536 = vsub.f32 %v532, %v535
      %v537 = vmul.f32 %v536, 1.442695
      %v538 = vpow.pop %v537
      %v539 = vsel %vm273, %v538, 0.0
      %540 = vadd.xlane.f32.xlu0 %v539
      %v541 = vpop.xlane.xlu0 %540
      %v542 = vrcp.pop %v541
      %v543 = vmul.f32 %v538, %v542
      %v544 = vpack.c.bf16 %v543, %v543
      %545 = vrot.lane.b32.xlu0 %v269, 40
      %v546 = vpop.permute.xlu0 %545
      %v548 = vsel %vm273, %v544, 0
      %v551 = vsel %vm311, %v546, 0
      %553 = vmatpush.bf16.msra.mxu0 0
      %554 = vmatpush.bf16.msra.mxu0 0
      %555 = vmatpush.bf16.msra.mxu0 0
      %556 = vmatpush.bf16.msra.mxu0 0
      %557 = vmatpush.bf16.msra.mxu0 0
      %558 = vmatpush.bf16.msra.mxu0 0
      %559 = vmatpush.bf16.msra.mxu0 0
      %560 = vmatpush.bf16.msra.mxu0 %v551
      %561 = vmatmul.bf16.gmra.mxu0 %v548
      %v562 = vpop.f32.mrf.mxu0
      %v563 = vadd.f32 0.0, %v562
      %v564 = vpop.f32.mrf.mxu0
      %565 = vdwg.mxu0
      %v566 = vpack.c.bf16 %v563, %v563
      %v567 = vld [vmem:[%s3 + $0xc] sm:$0xf]
      %v569 = vsel %vm273, %v566, 0
      %v572 = vsel %vm311, %v567, 0
      %574 = vmatpush.bf16.msra.mxu0 0
      %575 = vmatpush.bf16.msra.mxu0 0
      %576 = vmatpush.bf16.msra.mxu0 0
      %577 = vmatpush.bf16.msra.mxu0 0
      %578 = vmatpush.bf16.msra.mxu0 0
      %579 = vmatpush.bf16.msra.mxu0 0
      %580 = vmatpush.bf16.msra.mxu0 0
      %581 = vmatpush.bf16.msra.mxu0 %v572
      %582 = vmatmul.bf16.gmra.mxu0 %v569
      %v583 = vpop.f32.mrf.mxu0
      %v584 = vadd.f32 0.0, %v583
      %v585 = vpop.f32.mrf.mxu0
      %586 = vdwg.mxu0
      %v587 = vadd.f32 %v508, %v584
      %588 = vst [vmem:[%s219] sm:$0xff] %v587
      %p589 = scmp.lt.s32.totalorder %s16, 1
      %s590 = scalar_select %p589, %s16, 1
      %s591 = smul.addr %s590, 8
      %s592 = scalar_lea.vmem %s5, %s591
      // Predicated region
      $region41: #{gpt_forward.1} parent=39 // pred_check
        %p593 = pneg %p144
      $region42: #{gpt_forward.1} parent=39 // pred_check_branch
        %595 = sbr.rel (%p593) target = $region44
      $region43: #{gpt_forward.1} parent=39 // pred_region
        _
      $region44: #{gpt_forward.1} parent=39 // pred_fallthru
        _
    $region40: #{gpt_forward.1} parent=5 // pred_fallthru
      _
    %p596 = scmp.le.s32.totalorder 2, %s11
    // Predicated region
    $region45: #{gpt_forward.1} parent=5 // pred_check
      %p597 = pneg %p596
    $region46: #{gpt_forward.1} parent=5 // pred_check_branch
      %599 = sbr.rel (%p597) target = $region48
    $region47: #{gpt_forward.1} parent=5 // pred_region
      %s600 = ssub.s32 %s11, 2
      // Predicated region
      $region49: #{gpt_forward.1} parent=47 // pred_check
        %p601 = pneg %p150
      $region50: #{gpt_forward.1} parent=47 // pred_check_branch
        %603 = sbr.rel (%p601) target = $region52
      $region51: #{gpt_forward.1} parent=47 // pred_region
        %p604 = scmp.lt.s32.totalorder %s17, 1
        %s605 = scalar_select %p604, %s17, 1
        %s606 = smul.addr %s605, 8
        %s607 = scalar_lea.vmem %s5, %s606
      $region52: #{gpt_forward.1} parent=47 // pred_fallthru
        _
    $region48: #{gpt_forward.1} parent=5 // pred_fallthru
      _
  $region6: #{gpt_forward.1} parent=0 // loop_footer
    %s15 = sadd.s32 1, %s11
  $region7: #{gpt_forward.1} parent=0 // loop_footer_branch
    %10 = sbr.rel target = $region3
  $region8: #{gpt_forward.1} parent=0 // loop_exit
    _

</llo_original>
